<compile_context>
chip_gen: v7x
topology: tpu7x:2x2x1
jax: 0.10.0
libtpu: 0.0.40
codegen_flags: <defaults>
</compile_context>

<pallas_src>
import jax
import jax.numpy as jnp
from jax.experimental import pallas as pl
from jax.experimental.pallas import tpu as pltpu

_LOG_2PI = 1.8378770664093453  # log(2*pi)
_LOG_2 = 0.6931471805599453    # log(2)


def _round_up(x: int, m: int) -> int:
    return ((x + m - 1) // m) * m


# --------------------------------------------------------------------------
# Host-side parameter packing (feature-major):
#   - fuse the two head Linears into one (hidden, 2*action_dim) matrix
#   - store each Linear transposed: rows = n_out (8-aligned), cols[0:n_in] = W^T,
#     and the bias as a single column in a 128-lane-aligned region (col `bias_col`)
#   - concatenate all layer blocks along rows
# Result: ONE f32 buffer + static (row_offset, (n_in, n_out)) metadata.
# --------------------------------------------------------------------------
def _pack_params_t(params, dtype=jnp.float32):
    enc_layers, (wm, bm), (ws, bs) = params

    w_head = jnp.concatenate([wm, ws], axis=1)                        # (h, 2A)
    b_head = jnp.concatenate([jnp.reshape(bm, (-1,)), jnp.reshape(bs, (-1,))])
    layers = [(w, jnp.reshape(b, (-1,))) for (w, b) in enc_layers]
    layers.append((w_head, b_head))

    max_n_in = max(int(w.shape[0]) for w, _ in layers)
    bias_col = _round_up(max_n_in, 128)            # bias region starts on a lane-tile boundary
    n_cols = bias_col + 128

    blocks, offsets, shapes = [], [], []
    row = 0
    for w, b in layers:
        n_in, n_out = int(w.shape[0]), int(w.shape[1])
        n_rows = _round_up(n_out, 8)               # keep row offsets 8-aligned
        blk = jnp.zeros((n_rows, n_cols), dtype)
        blk = blk.at[:n_out, :n_in].set(jnp.transpose(w).astype(dtype))   # W^T
        blk = blk.at[:n_out, bias_col].set(b.astype(dtype))               # bias column
        blocks.append(blk)
        offsets.append(row)
        shapes.append((n_in, n_out))
        row += n_rows

    packed = jnp.concatenate(blocks, axis=0)       # (sum n_rows, n_cols)
    return packed, tuple(offsets), tuple(shapes), bias_col


# --------------------------------------------------------------------------
# Kernel: one lane-tile (batch columns) of the full forward pass.
#   refs: obs^T (obs_dim, tb), eps^T (A, tb), packed params (resident),
#         sample^T (A, tb), logp (1, tb)
# --------------------------------------------------------------------------
def _make_policy_kernel_t(offsets, shapes, bias_col: int, action_dim: int):
    n_layers = len(shapes)                         # encoder layers + fused head

    def kernel(obs_ref, eps_ref, params_ref, sample_ref, logp_ref):
        x = obs_ref[...].astype(jnp.float32)       # (obs_dim, tb), batch on lanes

        # ---- encoder (Linear + ReLU) and fused head, all from the packed buffer ----
        for li, ((n_in, n_out), r0) in enumerate(zip(shapes, offsets)):
            w_t = params_ref[r0:r0 + n_out, :n_in]                      # (n_out, n_in) static slice
            b = params_ref[r0:r0 + n_out, bias_col:bias_col + 1]        # (n_out, 1), lane-aligned
            x = jnp.dot(w_t, x, preferred_element_type=jnp.float32) + b
            if li < n_layers - 1:                  # last block is the fused head (no ReLU)
                x = jnp.maximum(x, 0.0)

        # x is now the fused head output: (2*action_dim, tb)
        mean = jnp.clip(x[:action_dim, :], -5.0, 5.0)                   # (A, tb)
        log_std = jnp.clip(x[action_dim:2 * action_dim, :], -20.0, 2.0)
        std = jnp.exp(log_std)

        eps = eps_ref[...].astype(jnp.float32)                          # (A, tb)
        z = mean + std * eps                       # rsample (pre-tanh)
        sample = jnp.tanh(z)

        # Normal(mean, std).log_prob(z) = -0.5*eps^2 - log_std - 0.5*log(2*pi)
        base_lp = -0.5 * (eps * eps) - log_std - 0.5 * _LOG_2PI
        # TanhTransform.log_abs_det_jacobian(z, tanh(z)) = 2*(log2 - z - softplus(-2z))
        log_det = 2.0 * (_LOG_2 - z - jax.nn.softplus(-2.0 * z))
        # Reduce over actions = sublane axis (8 rows); each lane (batch element) stays
        # independent, so garbage in padded lanes of a partial tile never leaks.
        logp = jnp.sum(base_lp - log_det, axis=0, keepdims=True)        # (1, tb)

        # Two fully lane-dense stores (no concat, no masked width-9 store).
        sample_ref[...] = sample.astype(sample_ref.dtype)
        logp_ref[...] = logp.astype(logp_ref.dtype)

    return kernel


def gaussian_mlp_policy_forward_t(obs_t, eps_t, params, *, max_lane_tile: int = 8192,
                                  min_grid_steps: int = 2, vmem_limit_bytes=None):
    """Feature-major fast path.

    obs_t: (obs_dim, B), eps_t: (action_dim, B).
    Returns (sample^T (A, B), log_prob (1, B)) — fully lane-dense outputs.
    """
    enc_layers, (wm, bm), (ws, bs) = params
    obs_dim, bsz = obs_t.shape
    action_dim = int(wm.shape[1])
    assert eps_t.shape == (action_dim, bsz)

    packed, offsets, shapes, bias_col = _pack_params_t(params)

    # Lane tile: multiple of 128 (or the full batch if <=128).  Sized to give at
    # least `min_grid_steps` grid steps (so "parallel" actually uses both TCs on
    # v7x) while staying large enough to amortize per-step overhead; capped so the
    # double-buffered working set stays a few MB (under v5e's 16 MiB scoped VMEM).
    if bsz <= 128:
        tb = bsz
    else:
        want = -(-bsz // max(min_grid_steps, 1))   # ceil(bsz / min_grid_steps)
        tb = min(_round_up(want, 128), _round_up(max_lane_tile, 128))
    grid = (pl.cdiv(bsz, tb),)

    kernel = _make_policy_kernel_t(offsets, shapes, bias_col, action_dim)

    sample_t, logp_t = pl.pallas_call(
        kernel,
        out_shape=(
            jax.ShapeDtypeStruct((action_dim, bsz), jnp.float32),
            jax.ShapeDtypeStruct((1, bsz), jnp.float32),
        ),
        grid=grid,
        in_specs=[
            pl.BlockSpec((obs_dim, tb), lambda i: (0, i)),      # obs^T: batch-tiled stream
            pl.BlockSpec((action_dim, tb), lambda i: (0, i)),   # eps^T: batch-tiled stream
            pl.BlockSpec(packed.shape, lambda i: (0, 0)),       # weights: resident, fetched once
        ],
        out_specs=(
            pl.BlockSpec((action_dim, tb), lambda i: (0, i)),   # sample^T
            pl.BlockSpec((1, tb), lambda i: (0, i)),            # log_prob
        ),
        compiler_params=pltpu.CompilerParams(
            dimension_semantics=("parallel",),                  # shard batch tiles over TCs
            vmem_limit_bytes=vmem_limit_bytes,
        ),
    )(obs_t, eps_t, packed)

    return sample_t, logp_t


def gaussian_mlp_policy_forward(obs, eps, params, **kwargs):
    """Module-compatible wrapper: obs (B, obs_dim), eps (B, A) -> (B, A), (B, 1).

    For maximum performance, feed/consume the transposed layout directly via
    gaussian_mlp_policy_forward_t (the boundary transposes here are plain XLA passes).
    """
    sample_t, logp_t = gaussian_mlp_policy_forward_t(
        jnp.transpose(obs), jnp.transpose(eps), params, **kwargs)
    return jnp.transpose(sample_t), jnp.transpose(logp_t)


# ---------------- deterministic parameter init (synthetic) ----------------
def _ortho(key, fan_in, fan_out):
    a = jax.random.normal(key, (fan_in, fan_out), dtype=jnp.float32)
    q, r = jnp.linalg.qr(a if fan_in >= fan_out else a.T)
    q = q * jnp.sign(jnp.diagonal(r))[None, :]
    if fan_in < fan_out:
        q = q.T
    return q.astype(jnp.float32)


def _xavier_uniform(key, fan_in, fan_out, gain=0.01):
    bound = gain * jnp.sqrt(6.0 / (fan_in + fan_out))
    return jax.random.uniform(key, (fan_in, fan_out), jnp.float32, -bound, bound)


def init_params(key, observation_dim, hidden_dims, action_dim):
    dims = [observation_dim] + list(hidden_dims)
    enc_layers = []
    for n_in, n_out in zip(dims[:-1], dims[1:]):
        key, sub = jax.random.split(key)
        w = _ortho(sub, n_in, n_out)
        b = jnp.zeros((1, n_out), jnp.float32)
        enc_layers.append((w, b))
    key, km, ks = jax.random.split(key, 3)
    wm = _xavier_uniform(km, hidden_dims[-1], action_dim)
    bm = jnp.zeros((1, action_dim), jnp.float32)
    ws = _xavier_uniform(ks, hidden_dims[-1], action_dim)
    bs = jnp.zeros((1, action_dim), jnp.float32)
    return enc_layers, (wm, bm), (ws, bs)


# ---------------- pure-JAX reference for sanity checking ----------------
def reference_forward(obs, eps, params):
    enc_layers, (wm, bm), (ws, bs) = params
    x = obs
    for (w, b) in enc_layers:
        x = jnp.maximum(x @ w + b, 0.0)
    mean = jnp.clip(x @ wm + bm, -5.0, 5.0)
    log_std = jnp.clip(x @ ws + bs, -20.0, 2.0)
    std = jnp.exp(log_std)
    z = mean + std * eps
    sample = jnp.tanh(z)
    base_lp = -0.5 * eps * eps - log_std - 0.5 * _LOG_2PI
    log_det = 2.0 * (_LOG_2 - z - jax.nn.softplus(-2.0 * z))
    logp = jnp.sum(base_lp - log_det, axis=-1, keepdims=True)
    return sample, logp


if __name__ == "__main__":
    observation_dim = 16
    hidden_dims = [32, 32]
    action_dim = 8

    key = jax.random.PRNGKey(0)
    key, k_params = jax.random.split(key)
    params = init_params(k_params, observation_dim, hidden_dims, action_dim)

    # batch=8: single tile.  batch=300: two grid steps (both TCs on v7x) + a
    # partial lane tile, exercising the masked-store path.
    for batch in (8, 300):
        key, k_obs, k_eps = jax.random.split(key, 3)
        obs = jax.random.normal(k_obs, (batch, observation_dim), dtype=jnp.float32)
        eps = jax.random.normal(k_eps, (batch, action_dim), dtype=jnp.float32)

        sample, log_prob = gaussian_mlp_policy_forward(obs, eps, params)
        jax.block_until_ready((sample, log_prob))

        ref_sample, ref_logp = reference_forward(obs, eps, params)
        assert sample.shape == (batch, action_dim)
        assert log_prob.shape == (batch, 1)
        assert jnp.allclose(sample, ref_sample, atol=1e-4, rtol=1e-4), (
            float(jnp.max(jnp.abs(sample - ref_sample))))
        assert jnp.allclose(log_prob, ref_logp, atol=1e-3, rtol=1e-4), (
            float(jnp.max(jnp.abs(log_prob - ref_logp))))

    print("KERNEL_OK")
</pallas_src>

<mosaic_0001>
module attributes {stable_mosaic.version = 11 : i64} {
  func.func @kernel(%arg0: i32, %arg1: memref<16x8xf32, #tpu.memory_space<vmem>>, %arg2: memref<8x8xf32, #tpu.memory_space<vmem>>, %arg3: memref<80x256xf32, #tpu.memory_space<vmem>>, %arg4: memref<8x8xf32, #tpu.memory_space<vmem>>, %arg5: memref<1x8xf32, #tpu.memory_space<vmem>>) attributes {dimension_semantics = [#tpu.dimension_semantics<parallel>], iteration_bounds = array<i64: 1>, scalar_prefetch = 0 : i64, scratch_operands = 0 : i64, tpu.core_type = #tpu.core_type<tc>, window_params = [{transform_indices = @transform_0, window_bounds = array<i64: 16, 8>}, {transform_indices = @transform_1, window_bounds = array<i64: 8, 8>}, {pipeline_mode = #tpu.pipeline_mode<synchronous>, transform_indices = @transform_2, window_bounds = array<i64: 80, 256>}, {transform_indices = @transform_3, window_bounds = array<i64: 8, 8>}, {transform_indices = @transform_4, window_bounds = array<i64: 1, 8>}]} {
    %c0 = arith.constant 0 : index
    %c0_0 = arith.constant 0 : index
    %0 = vector.load %arg1[%c0, %c0_0] : memref<16x8xf32, #tpu.memory_space<vmem>>, vector<16x8xf32>
    %c0_1 = arith.constant 0 : index
    %c0_2 = arith.constant 0 : index
    %1 = vector.load %arg3[%c0_1, %c0_2] : memref<80x256xf32, #tpu.memory_space<vmem>>, vector<32x16xf32>
    %c0_3 = arith.constant 0 : index
    %c128 = arith.constant 128 : index
    %2 = vector.load %arg3[%c0_3, %c128] : memref<80x256xf32, #tpu.memory_space<vmem>>, vector<32x1xf32>
    %cst = arith.constant dense<0.000000e+00> : vector<32x8xf32>
    %3 = tpu.matmul %1, %0, %cst {dimension_numbers = #tpu.dot_dimension_numbers<[1], [0], [0], [1], [0, 0, 1, 1], [], []>} : vector<32x16xf32>, vector<16x8xf32>, vector<32x8xf32> -> vector<32x8xf32>
    %4 = vector.broadcast %2 : vector<32x1xf32> to vector<32x8xf32>
    %5 = arith.addf %3, %4 : vector<32x8xf32>
    %cst_4 = arith.constant 0.000000e+00 : f32
    %6 = vector.broadcast %cst_4 : f32 to vector<32x8xf32>
    %7 = arith.maximumf %5, %6 : vector<32x8xf32>
    %c32 = arith.constant 32 : index
    %c0_5 = arith.constant 0 : index
    %8 = vector.load %arg3[%c32, %c0_5] : memref<80x256xf32, #tpu.memory_space<vmem>>, vector<32x32xf32>
    %c32_6 = arith.constant 32 : index
    %c128_7 = arith.constant 128 : index
    %9 = vector.load %arg3[%c32_6, %c128_7] : memref<80x256xf32, #tpu.memory_space<vmem>>, vector<32x1xf32>
    %cst_8 = arith.constant dense<0.000000e+00> : vector<32x8xf32>
    %10 = tpu.matmul %8, %7, %cst_8 {dimension_numbers = #tpu.dot_dimension_numbers<[1], [0], [0], [1], [0, 0, 1, 1], [], []>} : vector<32x32xf32>, vector<32x8xf32>, vector<32x8xf32> -> vector<32x8xf32>
    %11 = vector.broadcast %9 : vector<32x1xf32> to vector<32x8xf32>
    %12 = arith.addf %10, %11 : vector<32x8xf32>
    %cst_9 = arith.constant 0.000000e+00 : f32
    %13 = vector.broadcast %cst_9 : f32 to vector<32x8xf32>
    %14 = arith.maximumf %12, %13 : vector<32x8xf32>
    %c64 = arith.constant 64 : index
    %c0_10 = arith.constant 0 : index
    %15 = vector.load %arg3[%c64, %c0_10] : memref<80x256xf32, #tpu.memory_space<vmem>>, vector<16x32xf32>
    %c64_11 = arith.constant 64 : index
    %c128_12 = arith.constant 128 : index
    %16 = vector.load %arg3[%c64_11, %c128_12] : memref<80x256xf32, #tpu.memory_space<vmem>>, vector<16x1xf32>
    %cst_13 = arith.constant dense<0.000000e+00> : vector<16x8xf32>
    %17 = tpu.matmul %15, %14, %cst_13 {dimension_numbers = #tpu.dot_dimension_numbers<[1], [0], [0], [1], [0, 0, 1, 1], [], []>} : vector<16x32xf32>, vector<32x8xf32>, vector<16x8xf32> -> vector<16x8xf32>
    %18 = vector.broadcast %16 : vector<16x1xf32> to vector<16x8xf32>
    %19 = arith.addf %17, %18 : vector<16x8xf32>
    %20 = vector.extract_strided_slice %19 {offsets = [0, 0], sizes = [8, 8], strides = [1, 1]} : vector<16x8xf32> to vector<8x8xf32>
    %cst_14 = arith.constant -5.000000e+00 : f32
    %cst_15 = arith.constant 5.000000e+00 : f32
    %21 = vector.broadcast %cst_14 : f32 to vector<8x8xf32>
    %22 = arith.maximumf %21, %20 : vector<8x8xf32>
    %23 = vector.broadcast %cst_15 : f32 to vector<8x8xf32>
    %24 = arith.minimumf %23, %22 : vector<8x8xf32>
    %25 = vector.extract_strided_slice %19 {offsets = [8, 0], sizes = [8, 8], strides = [1, 1]} : vector<16x8xf32> to vector<8x8xf32>
    %cst_16 = arith.constant -2.000000e+01 : f32
    %cst_17 = arith.constant 2.000000e+00 : f32
    %26 = vector.broadcast %cst_16 : f32 to vector<8x8xf32>
    %27 = arith.maximumf %26, %25 : vector<8x8xf32>
    %28 = vector.broadcast %cst_17 : f32 to vector<8x8xf32>
    %29 = arith.minimumf %28, %27 : vector<8x8xf32>
    %30 = math.exp %29 : vector<8x8xf32>
    %c0_18 = arith.constant 0 : index
    %c0_19 = arith.constant 0 : index
    %31 = vector.load %arg2[%c0_18, %c0_19] : memref<8x8xf32, #tpu.memory_space<vmem>>, vector<8x8xf32>
    %32 = arith.mulf %30, %31 : vector<8x8xf32>
    %33 = arith.addf %24, %32 : vector<8x8xf32>
    %34 = math.tanh %33 : vector<8x8xf32>
    %35 = arith.mulf %31, %31 : vector<8x8xf32>
    %cst_20 = arith.constant -5.000000e-01 : f32
    %36 = vector.broadcast %cst_20 : f32 to vector<8x8xf32>
    %37 = arith.mulf %36, %35 : vector<8x8xf32>
    %38 = arith.subf %37, %29 : vector<8x8xf32>
    %cst_21 = arith.constant 0.918938517 : f32
    %39 = vector.broadcast %cst_21 : f32 to vector<8x8xf32>
    %40 = arith.subf %38, %39 : vector<8x8xf32>
    %cst_22 = arith.constant 0.693147182 : f32
    %41 = vector.broadcast %cst_22 : f32 to vector<8x8xf32>
    %42 = arith.subf %41, %33 : vector<8x8xf32>
    %cst_23 = arith.constant -2.000000e+00 : f32
    %43 = vector.broadcast %cst_23 : f32 to vector<8x8xf32>
    %44 = arith.mulf %43, %33 : vector<8x8xf32>
    %cst_24 = arith.constant 0.000000e+00 : f32
    %45 = vector.broadcast %cst_24 : f32 to vector<8x8xf32>
    %46 = arith.maximumf %44, %45 : vector<8x8xf32>
    %47 = vector.broadcast %cst_24 : f32 to vector<8x8xf32>
    %48 = arith.subf %44, %47 : vector<8x8xf32>
    %49 = arith.cmpf one, %48, %48 : vector<8x8xf32>
    %50 = vector.broadcast %cst_24 : f32 to vector<8x8xf32>
    %51 = arith.addf %44, %50 : vector<8x8xf32>
    %52 = math.absf %48 : vector<8x8xf32>
    %cst_25 = arith.constant 0.000000e+00 : f32
    %53 = vector.broadcast %cst_25 : f32 to vector<8x8xf32>
    %54 = arith.subf %53, %52 : vector<8x8xf32>
    %55 = math.exp %54 : vector<8x8xf32>
    %56 = math.log1p %55 : vector<8x8xf32>
    %57 = arith.addf %46, %56 : vector<8x8xf32>
    %58 = arith.select %49, %51, %57 : vector<8x8xi1>, vector<8x8xf32>
    %59 = arith.subf %42, %58 : vector<8x8xf32>
    %cst_26 = arith.constant 2.000000e+00 : f32
    %60 = vector.broadcast %cst_26 : f32 to vector<8x8xf32>
    %61 = arith.mulf %60, %59 : vector<8x8xf32>
    %62 = arith.subf %40, %61 : vector<8x8xf32>
    %cst_27 = arith.constant dense<0.000000e+00> : vector<8xf32>
    %63 = vector.multi_reduction <add>, %62, %cst_27 [0] : vector<8x8xf32> to vector<8xf32>
    %64 = vector.shape_cast %63 : vector<8xf32> to vector<1x8xf32>
    %c0_28 = arith.constant 0 : index
    %c0_29 = arith.constant 0 : index
    %65 = vector.load %arg4[%c0_28, %c0_29] : memref<8x8xf32, #tpu.memory_space<vmem>>, vector<8x8xf32>
    tpu.vector_store %arg4[%c0_28, %c0_29], %34 {strides = array<i32>} : memref<8x8xf32, #tpu.memory_space<vmem>>, vector<8x8xf32>,
    %c0_30 = arith.constant 0 : index
    %c0_31 = arith.constant 0 : index
    %66 = vector.load %arg5[%c0_30, %c0_31] : memref<1x8xf32, #tpu.memory_space<vmem>>, vector<1x8xf32>
    tpu.vector_store %arg5[%c0_30, %c0_31], %64 {strides = array<i32>} : memref<1x8xf32, #tpu.memory_space<vmem>>, vector<1x8xf32>,
    return
  }
  func.func @transform_0(%arg0: i32) -> (i32, i32) {
    %c0_i32 = arith.constant 0 : i32
    %c0_i32_0 = arith.constant 0 : i32
    return %c0_i32, %arg0 : i32, i32
  }
  func.func @transform_1(%arg0: i32) -> (i32, i32) {
    %c0_i32 = arith.constant 0 : i32
    %c0_i32_0 = arith.constant 0 : i32
    return %c0_i32, %arg0 : i32, i32
  }
  func.func @transform_2(%arg0: i32) -> (i32, i32) {
    %c0_i32 = arith.constant 0 : i32
    %c0_i32_0 = arith.constant 0 : i32
    %c0_i32_1 = arith.constant 0 : i32
    return %c0_i32, %c0_i32_0 : i32, i32
  }
  func.func @transform_3(%arg0: i32) -> (i32, i32) {
    %c0_i32 = arith.constant 0 : i32
    %c0_i32_0 = arith.constant 0 : i32
    return %c0_i32, %arg0 : i32, i32
  }
  func.func @transform_4(%arg0: i32) -> (i32, i32) {
    %c0_i32 = arith.constant 0 : i32
    %c0_i32_0 = arith.constant 0 : i32
    return %c0_i32, %arg0 : i32, i32
  }
}

</mosaic_0001>

<llo_original>
// kernel: tpu_custom_call.1
$region0: #{tpu_custom_call.1}
  #allocation0 [shape = 'u32[]', space=smem, size = 0x4, offset = 0x4, fixed_abs, tag = 'smem constant byte address 0x4 - core index']
  #allocation1 [shape = 'u32[144,128]{1,0:T(1,128)}', space=vmem, size = 0x12000, scoped, tag = 'internal scratch']
  %s0 = inlined_call_operand.vmem [shape: f32[16,8], index: 0, kind: input, shape index: {}]
  %s1 = inlined_call_operand.vmem [shape: f32[8,8], index: 1, kind: input, shape index: {}]
  %s2 = inlined_call_operand.hbm [shape: f32[80,256], index: 2, kind: input, shape index: {}]
  %s3 = inlined_call_operand.hbm [shape: f32[8,8], index: 3, kind: output, shape index: {0}]
  %s4 = inlined_call_operand.hbm [shape: f32[1,8], index: 4, kind: output, shape index: {1}]
  %5 = xla_tuple %s3, %s4
  %s6 = sld [smem:[#allocation0]]
  $region34: #{tpu_custom_call.1} parent=0
    _
  %s8 = ssub.s32 1, %s6
  %s9 = scalar_select 0, %s8, %s6
  $region1: #{tpu_custom_call.1} parent=0
    #allocation2 [shape = 'u8[81920]{0}', space=vmem, size = 0x14000, scoped, tag = 'input window, operand 2, single buffered']
    #allocation3 [shape = 's32[1]{0}', space=sflag, size = 0x4, scoped, tag = 'scoped memory for tpu_custom_call.1']
    #allocation4 [shape = 's32[1]{0}', space=sflag, size = 0x4, scoped, tag = 'scoped memory for tpu_custom_call.1']
    #allocation5 [shape = 'u8[4096]{0}', space=vmem, size = 0x1000, scoped, tag = 'output window, operand 0, single buffered']
    #allocation6 [shape = 'u8[512]{0}', space=vmem, size = 0x400, scoped, tag = 'output window, operand 1, single buffered']
    #allocation7 [shape = 's32[1]{0}', space=sflag, size = 0x4, scoped, tag = 'scoped memory for tpu_custom_call.1']
    %10 = vsyncpa [#allocation3], 0
    %11 = vsyncpa [#allocation4], 0
    %12 = vsyncpa [#allocation7], 0
    // Predicated region
    $region2: #{tpu_custom_call.1} parent=1 // pred_check
      _
    $region3: #{tpu_custom_call.1} parent=1 // pred_check_branch
      %14 = sbr.rel (0) target = $region5
    $region4: #{tpu_custom_call.1} parent=1 // pred_region
      _
    $region5: #{tpu_custom_call.1} parent=1 // pred_fallthru
      _
    // Predicated region
    $region6: #{tpu_custom_call.1} parent=1 // pred_check
      _
    $region7: #{tpu_custom_call.1} parent=1 // pred_check_branch
      %16 = sbr.rel (0) target = $region9
    $region8: #{tpu_custom_call.1} parent=1 // pred_region
      _
    $region9: #{tpu_custom_call.1} parent=1 // pred_fallthru
      _
    // Predicated region
    $region10: #{tpu_custom_call.1} parent=1 // pred_check
      _
    $region11: #{tpu_custom_call.1} parent=1 // pred_check_branch
      %18 = sbr.rel (0) target = $region13
    $region12: #{tpu_custom_call.1} parent=1 // pred_region
      %s20 = ssub.s32 2560, 2560
      %21 = vsyncadd [#allocation3], %s20
      %s22 = sshll.u32 [#allocation2], 4
      %s23 = int_to_ptr.vmem [resolvable:$true] %s22
      %28 = dma.hbm_to_vmem [thread:$0]  %s2, 2560, %s23, [#allocation3], 256, 256, 16
    $region13: #{tpu_custom_call.1} parent=1 // pred_fallthru
      _
    // Predicated region
    $region14: #{tpu_custom_call.1} parent=1 // pred_check
      _
    $region15: #{tpu_custom_call.1} parent=1 // pred_check_branch
      %30 = sbr.rel (0) target = $region17
    $region16: #{tpu_custom_call.1} parent=1 // pred_region
      %31 = dma.done [#allocation3], 2560
    $region17: #{tpu_custom_call.1} parent=1 // pred_fallthru
      _
    %v32 = vld [vmem:[%s0] sm:$0xff]
    %v33 = vld [vmem:[%s0 + $0x8] sm:$0xff]
    %v34 = vld [vmem:[#allocation2] sm:$0xff]
    %v35 = vld [vmem:[#allocation2 + $0x10] sm:$0xff]
    %v36 = vld [vmem:[#allocation2 + $0x20] sm:$0xff]
    %v37 = vld [vmem:[#allocation2 + $0x30] sm:$0xff]
    %v38 = vld [vmem:[#allocation2 + $0x8] sm:$0xff]
    %v39 = vld [vmem:[#allocation2 + $0x18] sm:$0xff]
    %v40 = vld [vmem:[#allocation2 + $0x28] sm:$0xff]
    %v41 = vld [vmem:[#allocation2 + $0x38] sm:$0xff]
    %43 = vset.pattern.permute.xlu0 0
    %44 = vperm.xlu0 %43, %v38
    %v45 = vpop.permute.xlu0 %44
    %48 = vset.pattern.permute.xlu0 0
    %49 = vperm.xlu0 %48, %v39
    %v50 = vpop.permute.xlu0 %49
    %53 = vset.pattern.permute.xlu0 0
    %54 = vperm.xlu0 %53, %v40
    %v55 = vpop.permute.xlu0 %54
    %58 = vset.pattern.permute.xlu0 0
    %59 = vperm.xlu0 %58, %v41
    %v60 = vpop.permute.xlu0 %59
    %vm62 = vcmask 130048
    %v64 = vsel %vm62, %v34, 0
    %v67 = vsel %vm62, %v35, 0
    %v70 = vsel %vm62, %v36, 0
    %v73 = vsel %vm62, %v37, 0
    %75 = vmatprep.subr.mxu0 0.0
    %76 = vmatpush1.msra.mxu0 %v32
    %77 = vmatprep.subr.mxu0 0.0
    %78 = vmatpush1.msra.mxu0 %v33
    %79 = vmatprep.subr.mxu0 0.0
    %80 = vmatpush1.msra.mxu0 0.0
    %81 = vmatprep.subr.mxu0 0.0
    %82 = vmatpush1.msra.mxu0 0.0
    %83 = vmatprep.subr.mxu0 0.0
    %84 = vmatpush1.msra.mxu0 0.0
    %85 = vmatprep.subr.mxu0 0.0
    %86 = vmatpush1.msra.mxu0 0.0
    %87 = vmatprep.subr.mxu0 0.0
    %88 = vmatpush1.msra.mxu0 0.0
    %89 = vmatprep.subr.mxu0 0.0
    %90 = vmatpush1.msra.mxu0 0.0
    %91 = vmatprep.subr.mxu0 0.0
    %92 = vmatpush1.msra.mxu0 0.0
    %93 = vmatprep.subr.mxu0 0.0
    %94 = vmatpush1.msra.mxu0 0.0
    %95 = vmatprep.subr.mxu0 0.0
    %96 = vmatpush1.msra.mxu0 0.0
    %97 = vmatprep.subr.mxu0 0.0
    %98 = vmatpush1.msra.mxu0 0.0
    %99 = vmatprep.subr.mxu0 0.0
    %100 = vmatpush1.msra.mxu0 0.0
    %101 = vmatprep.subr.mxu0 0.0
    %102 = vmatpush1.msra.mxu0 0.0
    %103 = vmatprep.subr.mxu0 0.0
    %104 = vmatpush1.msra.mxu0 0.0
    %105 = vmatprep.subr.mxu0 0.0
    %106 = vmatpush1.msra.mxu0 0.0
    %107 = vmatprep.subr.mxu0 0.0
    %108 = vmatpush1.msra.mxu0 0.0
    %109 = vmatprep.subr.mxu0 0.0
    %110 = vmatpush1.msra.mxu0 0.0
    %111 = vmatprep.subr.mxu0 0.0
    %112 = vmatpush1.msra.mxu0 0.0
    %113 = vmatprep.subr.mxu0 0.0
    %114 = vmatpush1.msra.mxu0 0.0
    %115 = vmatprep.subr.mxu0 0.0
    %116 = vmatpush1.msra.mxu0 0.0
    %117 = vmatprep.subr.mxu0 0.0
    %118 = vmatpush1.msra.mxu0 0.0
    %119 = vmatprep.subr.mxu0 0.0
    %120 = vmatpush1.msra.mxu0 0.0
    %121 = vmatprep.subr.mxu0 0.0
    %122 = vmatpush1.msra.mxu0 0.0
    %123 = vmatprep.subr.mxu0 0.0
    %124 = vmatpush1.msra.mxu0 0.0
    %125 = vmatprep.subr.mxu0 0.0
    %126 = vmatpush1.msra.mxu0 0.0
    %127 = vmatprep.subr.mxu0 0.0
    %128 = vmatpush1.msra.mxu0 0.0
    %129 = vmatprep.subr.mxu0 0.0
    %130 = vmatpush1.msra.mxu0 0.0
    %131 = vmatprep.subr.mxu0 0.0
    %132 = vmatpush1.msra.mxu0 0.0
    %133 = vmatprep.subr.mxu0 0.0
    %134 = vmatpush1.msra.mxu0 0.0
    %135 = vmatprep.subr.mxu0 0.0
    %136 = vmatpush1.msra.mxu0 0.0
    %137 = vmatprep.subr.mxu0 0.0
    %138 = vmatpush1.msra.mxu0 0.0
    %139 = vmatprep.mubr.f32.mxu0 0.0
    %140 = vmatmul.mubr.f32.gmra.mrb[0].mxu0 %v64
    %v141 = vpop.f32.mrb[0].mxu0
    %v142 = vadd.f32 %v45, %v141
    %v143 = vpop.f32.mrb[0].mxu0
    %144 = vmatprep.mubr.f32.mxu0 0.0
    %145 = vmatmul.mubr.f32.gmra.mrb[0].mxu0 %v67
    %v146 = vpop.f32.mrb[0].mxu0
    %v147 = vadd.f32 %v50, %v146
    %v148 = vpop.f32.mrb[0].mxu0
    %149 = vmatprep.mubr.f32.mxu0 0.0
    %150 = vmatmul.mubr.f32.gmra.mrb[0].mxu0 %v70
    %v151 = vpop.f32.mrb[0].mxu0
    %v152 = vadd.f32 %v55, %v151
    %v153 = vpop.f32.mrb[0].mxu0
    %154 = vmatprep.mubr.f32.mxu0 0.0
    %155 = vmatmul.mubr.f32.gmra.mrb[0].mxu0 %v73
    %v156 = vpop.f32.mrb[0].mxu0
    %v157 = vadd.f32 %v60, %v156
    %v158 = vpop.f32.mrb[0].mxu0
    %159 = vdwg.mxu0
    %v160 = vmax.f32 %v142, 0.0
    %v161 = vmax.f32 %v147, 0.0
    %v162 = vmax.f32 %v152, 0.0
    %v163 = vmax.f32 %v157, 0.0
    %v164 = vld [vmem:[#allocation2 + $0x40] sm:$0xff]
    %v165 = vld [vmem:[#allocation2 + $0x50] sm:$0xff]
    %v166 = vld [vmem:[#allocation2 + $0x60] sm:$0xff]
    %v167 = vld [vmem:[#allocation2 + $0x70] sm:$0xff]
    %v168 = vld [vmem:[#allocation2 + $0x48] sm:$0xff]
    %v169 = vld [vmem:[#allocation2 + $0x58] sm:$0xff]
    %v170 = vld [vmem:[#allocation2 + $0x68] sm:$0xff]
    %v171 = vld [vmem:[#allocation2 + $0x78] sm:$0xff]
    %173 = vset.pattern.permute.xlu0 0
    %174 = vperm.xlu0 %173, %v168
    %v175 = vpop.permute.xlu0 %174
    %178 = vset.pattern.permute.xlu0 0
    %179 = vperm.xlu0 %178, %v169
    %v180 = vpop.permute.xlu0 %179
    %183 = vset.pattern.permute.xlu0 0
    %184 = vperm.xlu0 %183, %v170
    %v185 = vpop.permute.xlu0 %184
    %188 = vset.pattern.permute.xlu0 0
    %189 = vperm.xlu0 %188, %v171
    %v190 = vpop.permute.xlu0 %189
    %vm192 = vcmask 261120
    %v194 = vsel %vm192, %v164, 0
    %v197 = vsel %vm192, %v165, 0
    %v200 = vsel %vm192, %v166, 0
    %v203 = vsel %vm192, %v167, 0
    %205 = vmatprep.subr.mxu0 0.0
    %206 = vmatpush1.msra.mxu0 %v160
    %207 = vmatprep.subr.mxu0 0.0
    %208 = vmatpush1.msra.mxu0 %v161
    %209 = vmatprep.subr.mxu0 0.0
    %210 = vmatpush1.msra.mxu0 %v162
    %211 = vmatprep.subr.mxu0 0.0
    %212 = vmatpush1.msra.mxu0 %v163
    %213 = vmatprep.subr.mxu0 0.0
    %214 = vmatpush1.msra.mxu0 0.0
    %215 = vmatprep.subr.mxu0 0.0
    %216 = vmatpush1.msra.mxu0 0.0
    %217 = vmatprep.subr.mxu0 0.0
    %218 = vmatpush1.msra.mxu0 0.0
    %219 = vmatprep.subr.mxu0 0.0
    %220 = vmatpush1.msra.mxu0 0.0
    %221 = vmatprep.subr.mxu0 0.0
    %222 = vmatpush1.msra.mxu0 0.0
    %223 = vmatprep.subr.mxu0 0.0
    %224 = vmatpush1.msra.mxu0 0.0
    %225 = vmatprep.subr.mxu0 0.0
    %226 = vmatpush1.msra.mxu0 0.0
    %227 = vmatprep.subr.mxu0 0.0
    %228 = vmatpush1.msra.mxu0 0.0
    %229 = vmatprep.subr.mxu0 0.0
    %230 = vmatpush1.msra.mxu0 0.0
    %231 = vmatprep.subr.mxu0 0.0
    %232 = vmatpush1.msra.mxu0 0.0
    %233 = vmatprep.subr.mxu0 0.0
    %234 = vmatpush1.msra.mxu0 0.0
    %235 = vmatprep.subr.mxu0 0.0
    %236 = vmatpush1.msra.mxu0 0.0
    %237 = vmatprep.subr.mxu0 0.0
    %238 = vmatpush1.msra.mxu0 0.0
    %239 = vmatprep.subr.mxu0 0.0
    %240 = vmatpush1.msra.mxu0 0.0
    %241 = vmatprep.subr.mxu0 0.0
    %242 = vmatpush1.msra.mxu0 0.0
    %243 = vmatprep.subr.mxu0 0.0
    %244 = vmatpush1.msra.mxu0 0.0
    %245 = vmatprep.subr.mxu0 0.0
    %246 = vmatpush1.msra.mxu0 0.0
    %247 = vmatprep.subr.mxu0 0.0
    %248 = vmatpush1.msra.mxu0 0.0
    %249 = vmatprep.subr.mxu0 0.0
    %250 = vmatpush1.msra.mxu0 0.0
    %251 = vmatprep.subr.mxu0 0.0
    %252 = vmatpush1.msra.mxu0 0.0
    %253 = vmatprep.subr.mxu0 0.0
    %254 = vmatpush1.msra.mxu0 0.0
    %255 = vmatprep.subr.mxu0 0.0
    %256 = vmatpush1.msra.mxu0 0.0
    %257 = vmatprep.subr.mxu0 0.0
    %258 = vmatpush1.msra.mxu0 0.0
    %259 = vmatprep.subr.mxu0 0.0
    %260 = vmatpush1.msra.mxu0 0.0
    %261 = vmatprep.subr.mxu0 0.0
    %262 = vmatpush1.msra.mxu0 0.0
    %263 = vmatprep.subr.mxu0 0.0
    %264 = vmatpush1.msra.mxu0 0.0
    %265 = vmatprep.subr.mxu0 0.0
    %266 = vmatpush1.msra.mxu0 0.0
    %267 = vmatprep.subr.mxu0 0.0
    %268 = vmatpush1.msra.mxu0 0.0
    %269 = vmatprep.mubr.f32.mxu0 0.0
    %270 = vmatmul.mubr.f32.gmra.mrb[0].mxu0 %v194
    %v271 = vpop.f32.mrb[0].mxu0
    %v272 = vadd.f32 %v175, %v271
    %v273 = vpop.f32.mrb[0].mxu0
    %274 = vmatprep.mubr.f32.mxu0 0.0
    %275 = vmatmul.mubr.f32.gmra.mrb[0].mxu0 %v197
    %v276 = vpop.f32.mrb[0].mxu0
    %v277 = vadd.f32 %v180, %v276
    %v278 = vpop.f32.mrb[0].mxu0
    %279 = vmatprep.mubr.f32.mxu0 0.0
    %280 = vmatmul.mubr.f32.gmra.mrb[0].mxu0 %v200
    %v281 = vpop.f32.mrb[0].mxu0
    %v282 = vadd.f32 %v185, %v281
    %v283 = vpop.f32.mrb[0].mxu0
    %284 = vmatprep.mubr.f32.mxu0 0.0
    %285 = vmatmul.mubr.f32.gmra.mrb[0].mxu0 %v203
    %v286 = vpop.f32.mrb[0].mxu0
    %v287 = vadd.f32 %v190, %v286
    %v288 = vpop.f32.mrb[0].mxu0
    %289 = vdwg.mxu0
    %v290 = vmax.f32 %v272, 0.0
    %v291 = vmax.f32 %v277, 0.0
    %v292 = vmax.f32 %v282, 0.0
    %v293 = vmax.f32 %v287, 0.0
    %v294 = vld [vmem:[#allocation2 + $0x80] sm:$0xff]
    %v295 = vld [vmem:[#allocation2 + $0x90] sm:$0xff]
    %v296 = vld [vmem:[#allocation2 + $0x88] sm:$0xff]
    %v297 = vld [vmem:[#allocation2 + $0x98] sm:$0xff]
    %299 = vset.pattern.permute.xlu0 0
    %300 = vperm.xlu0 %299, %v296
    %v301 = vpop.permute.xlu0 %300
    %304 = vset.pattern.permute.xlu0 0
    %305 = vperm.xlu0 %304, %v297
    %v306 = vpop.permute.xlu0 %305
    %v309 = vsel %vm192, %v294, 0
    %v312 = vsel %vm192, %v295, 0
    %314 = vmatprep.subr.mxu0 0.0
    %315 = vmatpush1.msra.mxu0 %v290
    %316 = vmatprep.subr.mxu0 0.0
    %317 = vmatpush1.msra.mxu0 %v291
    %318 = vmatprep.subr.mxu0 0.0
    %319 = vmatpush1.msra.mxu0 %v292
    %320 = vmatprep.subr.mxu0 0.0
    %321 = vmatpush1.msra.mxu0 %v293
    %322 = vmatprep.subr.mxu0 0.0
    %323 = vmatpush1.msra.mxu0 0.0
    %324 = vmatprep.subr.mxu0 0.0
    %325 = vmatpush1.msra.mxu0 0.0
    %326 = vmatprep.subr.mxu0 0.0
    %327 = vmatpush1.msra.mxu0 0.0
    %328 = vmatprep.subr.mxu0 0.0
    %329 = vmatpush1.msra.mxu0 0.0
    %330 = vmatprep.subr.mxu0 0.0
    %331 = vmatpush1.msra.mxu0 0.0
    %332 = vmatprep.subr.mxu0 0.0
    %333 = vmatpush1.msra.mxu0 0.0
    %334 = vmatprep.subr.mxu0 0.0
    %335 = vmatpush1.msra.mxu0 0.0
    %336 = vmatprep.subr.mxu0 0.0
    %337 = vmatpush1.msra.mxu0 0.0
    %338 = vmatprep.subr.mxu0 0.0
    %339 = vmatpush1.msra.mxu0 0.0
    %340 = vmatprep.subr.mxu0 0.0
    %341 = vmatpush1.msra.mxu0 0.0
    %342 = vmatprep.subr.mxu0 0.0
    %343 = vmatpush1.msra.mxu0 0.0
    %344 = vmatprep.subr.mxu0 0.0
    %345 = vmatpush1.msra.mxu0 0.0
    %346 = vmatprep.subr.mxu0 0.0
    %347 = vmatpush1.msra.mxu0 0.0
    %348 = vmatprep.subr.mxu0 0.0
    %349 = vmatpush1.msra.mxu0 0.0
    %350 = vmatprep.subr.mxu0 0.0
    %351 = vmatpush1.msra.mxu0 0.0
    %352 = vmatprep.subr.mxu0 0.0
    %353 = vmatpush1.msra.mxu0 0.0
    %354 = vmatprep.subr.mxu0 0.0
    %355 = vmatpush1.msra.mxu0 0.0
    %356 = vmatprep.subr.mxu0 0.0
    %357 = vmatpush1.msra.mxu0 0.0
    %358 = vmatprep.subr.mxu0 0.0
    %359 = vmatpush1.msra.mxu0 0.0
    %360 = vmatprep.subr.mxu0 0.0
    %361 = vmatpush1.msra.mxu0 0.0
    %362 = vmatprep.subr.mxu0 0.0
    %363 = vmatpush1.msra.mxu0 0.0
    %364 = vmatprep.subr.mxu0 0.0
    %365 = vmatpush1.msra.mxu0 0.0
    %366 = vmatprep.subr.mxu0 0.0
    %367 = vmatpush1.msra.mxu0 0.0
    %368 = vmatprep.subr.mxu0 0.0
    %369 = vmatpush1.msra.mxu0 0.0
    %370 = vmatprep.subr.mxu0 0.0
    %371 = vmatpush1.msra.mxu0 0.0
    %372 = vmatprep.subr.mxu0 0.0
    %373 = vmatpush1.msra.mxu0 0.0
    %374 = vmatprep.subr.mxu0 0.0
    %375 = vmatpush1.msra.mxu0 0.0
    %376 = vmatprep.subr.mxu0 0.0
    %377 = vmatpush1.msra.mxu0 0.0
    %378 = vmatprep.mubr.f32.mxu0 0.0
    %379 = vmatmul.mubr.f32.gmra.mrb[0].mxu0 %v309
    %v380 = vpop.f32.mrb[0].mxu0
    %v381 = vadd.f32 %v301, %v380
    %v382 = vpop.f32.mrb[0].mxu0
    %383 = vmatprep.mubr.f32.mxu0 0.0
    %384 = vmatmul.mubr.f32.gmra.mrb[0].mxu0 %v312
    %v385 = vpop.f32.mrb[0].mxu0
    %v386 = vadd.f32 %v306, %v385
    %v387 = vpop.f32.mrb[0].mxu0
    %388 = vdwg.mxu0
    %v389 = vmax.f32 %v381, -5.0
    %v390 = vmin.f32 %v389, 5.0
    %v391 = vmax.f32 %v386, -20.0
    %v392 = vmin.f32 %v391, 2.0
    %v393 = vmul.f32 %v392, 1.442695
    %v394 = vpow.pop %v393
    %v395 = vld [vmem:[%s1] sm:$0xff]
    %v396 = vmul.f32 %v394, %v395
    %v397 = vadd.f32 %v390, %v396
    %v398 = vtanh.pop %v397
    %v399 = vmul.f32 %v395, %v395
    %v400 = vmul.f32 %v399, -0.5
    %v401 = vsub.f32 %v400, %v392
    %v402 = vsub.f32 %v401, 0.9189385
    %v403 = vsub.f32 0.6931472, %v397
    %v404 = vmul.f32 %v397, -2.0
    %v405 = vmax.f32 %v404, 0.0
    %vm406 = vcmp.ne.f32.partialorder %v404, %v404
    %v407 = vadd.f32 %v404, 0.0
    %v408 = vand.u32 2147483647, %v404
    %v409 = vsub.f32 0.0, %v408
    %v410 = vmul.f32 %v409, 1.442695
    %v411 = vpow.pop %v410
    %v412 = vadd.f32 %v411, 1.0
    %v413 = vlog2.pop %v412
    %v414 = vmul.f32 %v413, 0.6931472
    %v415 = vmul.f32 -0.5, %v411
    %v416 = vadd.f32 %v415, 1.0
    %v417 = vmul.f32 %v416, %v411
    %v418 = vand.u32 2147483647, %v411
    %vm419 = vcmp.lt.f32.partialorder %v418, 0.0004427343
    %v420 = vsel %vm419, %v417, %v414
    %v421 = vadd.f32 %v405, %v420
    %v422 = vsel %vm406, %v407, %v421
    %v423 = vsub.f32 %v403, %v422
    %v424 = vmul.f32 %v423, 2.0
    %v425 = vsub.f32 %v402, %v424
    %vm426 = vcmask 64512
    %v427 = vsel %vm426, %v425, 0.0
    %v428 = vrot.slane %v427, 4
    %v429 = vadd.f32 %v427, %v428
    %v430 = vrot.slane %v429, 2
    %v431 = vadd.f32 %v429, %v430
    %v432 = vrot.slane %v431, 1
    %v433 = vadd.f32 %v431, %v432
    %434 = vst.msk [vmem:[#allocation5] sm:$0xff] %vm426, %v398
    %vm435 = vcmask 57344
    %436 = vst.msk [vmem:[#allocation6] sm:$0x1] %vm435, %v433
    // Predicated region
    $region18: #{tpu_custom_call.1} parent=1 // pred_check
      _
    $region19: #{tpu_custom_call.1} parent=1 // pred_check_branch
      %438 = sbr.rel (0) target = $region21
    $region20: #{tpu_custom_call.1} parent=1 // pred_region
      %s440 = ssub.s32 128, 128
      %441 = vsyncadd [#allocation4], %s440
      %s443 = sshll.u32 [#allocation5], 4
      %s444 = int_to_ptr.vmem [resolvable:$true] %s443
      %446 = dma.vmem_to_hbm [thread:$0]  %s444, 128, %s3, [#allocation4]
    $region21: #{tpu_custom_call.1} parent=1 // pred_fallthru
      _
    // Predicated region
    $region22: #{tpu_custom_call.1} parent=1 // pred_check
      _
    $region23: #{tpu_custom_call.1} parent=1 // pred_check_branch
      %448 = sbr.rel (0) target = $region25
    $region24: #{tpu_custom_call.1} parent=1 // pred_region
      %s450 = ssub.s32 16, 16
      %451 = vsyncadd [#allocation7], %s450
      %s453 = sshll.u32 [#allocation6], 4
      %s454 = int_to_ptr.vmem [resolvable:$true] %s453
      %456 = dma.vmem_to_hbm [thread:$0]  %s454, 16, %s4, [#allocation7]
    $region25: #{tpu_custom_call.1} parent=1 // pred_fallthru
      _
    // Predicated region
    $region26: #{tpu_custom_call.1} parent=1 // pred_check
      _
    $region27: #{tpu_custom_call.1} parent=1 // pred_check_branch
      %458 = sbr.rel (0) target = $region29
    $region28: #{tpu_custom_call.1} parent=1 // pred_region
      %459 = dma.done [#allocation4], 128
    $region29: #{tpu_custom_call.1} parent=1 // pred_fallthru
      _
    // Predicated region
    $region30: #{tpu_custom_call.1} parent=1 // pred_check
      _
    $region31: #{tpu_custom_call.1} parent=1 // pred_check_branch
      %461 = sbr.rel (0) target = $region33
    $region32: #{tpu_custom_call.1} parent=1 // pred_region
      %462 = dma.done [#allocation7], 16
    $region33: #{tpu_custom_call.1} parent=1 // pred_fallthru
      _
    %463 = vsyncpa [#allocation3], 1
    %464 = vsyncpa [#allocation4], 1
    %465 = vsyncpa [#allocation7], 1

</llo_original>
